<compile_context>
chip_gen: v5e
topology: v5e:2x2
jax: 0.10.0
libtpu: 0.0.40
codegen_flags: <defaults>
</compile_context>

<pallas_src>
import math
import jax
import jax.numpy as jnp
from jax.experimental import pallas as pl
from jax.experimental.pallas import tpu as pltpu

HIDDEN = 256


def _round_up(x, m):
    return ((x + m - 1) // m) * m


def _device_kind():
    try:
        return jax.devices()[0].device_kind.lower()
    except Exception:
        return ""


def _is_v7():
    return "v7" in _device_kind()


def _is_v5e():
    k = _device_kind()
    return ("v5e" in k) or ("v5 lite" in k) or ("v5lite" in k)


def mlp_kernel(obs_ref, w1_ref, b1_ref, w2_ref, b2_ref, w3_ref, b3_ref, out_ref):
    # Whole 3-layer MLP fused on one batch tile: three MXU matmuls + VPU bias/ReLU.
    # obs arrives as f32 from HBM and is cast to the compute dtype here (saves a
    # wrapper-side HBM pass); all dots accumulate in f32; bias/ReLU stay in f32.
    cdt = w1_ref.dtype
    x = obs_ref[...].astype(cdt)
    h1 = jnp.dot(x, w1_ref[...], preferred_element_type=jnp.float32) + b1_ref[...]
    h1 = jnp.maximum(h1, 0.0).astype(cdt)
    h2 = jnp.dot(h1, w2_ref[...], preferred_element_type=jnp.float32) + b2_ref[...]
    h2 = jnp.maximum(h2, 0.0).astype(cdt)
    y = jnp.dot(h2, w3_ref[...], preferred_element_type=jnp.float32) + b3_ref[...]
    out_ref[...] = y.astype(out_ref.dtype)


def prepare_params(params, compute_dtype=None):
    """One-time cast / layout prep of the weights (call once, reuse every forward).

    compute_dtype: None -> bf16 on v5e (bf16-native MXU), f32 elsewhere.
    Biases stay f32 (bias add + ReLU are done in f32 inside the kernel).
    """
    if compute_dtype is None:
        compute_dtype = jnp.bfloat16 if _is_v5e() else jnp.float32
    f32 = jnp.float32
    return {
        "w1": jnp.asarray(params["w1"], compute_dtype),
        "b1": jnp.asarray(params["b1"], f32).reshape(1, -1),
        "w2": jnp.asarray(params["w2"], compute_dtype),
        "b2": jnp.asarray(params["b2"], f32).reshape(1, -1),
        "w3": jnp.asarray(params["w3"], compute_dtype),
        "b3": jnp.asarray(params["b3"], f32).reshape(1, -1),
    }


def network_forward(obs, prepped, *, block_rows=None):
    """Pallas forward pass of the 3-layer MLP.

    obs: (B, in_dim) float32 (a 1-D (in_dim,) obs is also accepted, like the PyTorch module)
    prepped: output of prepare_params()
    returns: (B, out_dim) float32
    """
    squeeze = obs.ndim == 1
    if squeeze:
        obs = obs[None, :]
    if obs.dtype != jnp.float32:
        obs = obs.astype(jnp.float32)

    B, in_dim = obs.shape
    out_dim = prepped["w3"].shape[1]

    is_v7 = _is_v7()
    if block_rows is None:
        # Large tiles amortize per-grid-step overhead; cap lower on v7x (64 MiB VMEM).
        block_rows = 2048 if is_v7 else 4096

    # Tile selection: n_tiles tiles of TB rows each, TB a multiple of 8 sublanes,
    # sized so tail padding is small (not up to TB-1 dead rows).
    n_tiles = max(1, -(-B // block_rows))
    TB = _round_up(-(-B // n_tiles), 8)
    Bp = n_tiles * TB

    if Bp != B:
        obs_in = jnp.zeros((Bp, in_dim), obs.dtype).at[:B, :].set(obs)
    else:
        obs_in = obs

    wbytes = sum(
        int(prepped[k].size) * prepped[k].dtype.itemsize
        for k in ("w1", "b1", "w2", "b2", "w3", "b3")
    )
    flops = 2 * Bp * (in_dim * HIDDEN + HIDDEN * HIDDEN + HIDDEN * out_dim)
    bytes_accessed = Bp * in_dim * 4 + wbytes + Bp * out_dim * 4

    vmem_limit = (30 if is_v7 else 64) * 1024 * 1024

    out = pl.pallas_call(
        mlp_kernel,
        out_shape=jax.ShapeDtypeStruct((Bp, out_dim), jnp.float32),
        grid=(n_tiles,),
        in_specs=[
            # obs: tiled over batch; feature dim left unpadded (last dim == full array
            # dim satisfies the (8,128) exception). Kept f32 in HBM; cast in-kernel.
            pl.BlockSpec((TB, in_dim), lambda i: (i, 0)),
            # weights / biases: constant index_map -> fetched once, VMEM-resident.
            pl.BlockSpec((in_dim, HIDDEN), lambda i: (0, 0)),
            pl.BlockSpec((1, HIDDEN), lambda i: (0, 0)),
            pl.BlockSpec((HIDDEN, HIDDEN), lambda i: (0, 0)),
            pl.BlockSpec((1, HIDDEN), lambda i: (0, 0)),
            pl.BlockSpec((HIDDEN, out_dim), lambda i: (0, 0)),
            pl.BlockSpec((1, out_dim), lambda i: (0, 0)),
        ],
        # Unpadded out_dim (full-dim exception): masked vst, but ~(128/out_dim)x less
        # HBM writeback than a lane-padded output and no trailing feature slice.
        out_specs=pl.BlockSpec((TB, out_dim), lambda i: (i, 0)),
        compiler_params=pltpu.CompilerParams(
            # TODO(synk): on v7x verify "parallel" shards the batch grid across both
            # TensorCores; if one TC idles, switch to pltpu.CORE_PARALLEL here.
            dimension_semantics=("parallel",),
            vmem_limit_bytes=vmem_limit,
        ),
        cost_estimate=pl.CostEstimate(
            flops=flops, transcendentals=0, bytes_accessed=int(bytes_accessed)),
    )(obs_in, prepped["w1"], prepped["b1"], prepped["w2"], prepped["b2"],
      prepped["w3"], prepped["b3"])

    if Bp != B:
        out = out[:B]
    if squeeze:
        out = out[0]
    return out


def init_params(key, in_dim, out_dim):
    """PyTorch nn.Linear default init: U(-1/sqrt(fan_in), 1/sqrt(fan_in))."""
    ks = jax.random.split(key, 6)

    def linear(kw, kb, fan_in, fan_out):
        bound = 1.0 / math.sqrt(fan_in)
        w = jax.random.uniform(kw, (fan_in, fan_out), jnp.float32, -bound, bound)
        b = jax.random.uniform(kb, (1, fan_out), jnp.float32, -bound, bound)
        return w, b

    w1, b1 = linear(ks[0], ks[1], in_dim, HIDDEN)
    w2, b2 = linear(ks[2], ks[3], HIDDEN, HIDDEN)
    w3, b3 = linear(ks[4], ks[5], HIDDEN, out_dim)
    return {"w1": w1, "b1": b1, "w2": w2, "b2": b2, "w3": w3, "b3": b3}


def reference_forward(obs, p):
    h1 = jnp.maximum(obs @ p["w1"] + p["b1"], 0.0)
    h2 = jnp.maximum(h1 @ p["w2"] + p["b2"], 0.0)
    return h2 @ p["w3"] + p["b3"]


if __name__ == "__main__":
    key = jax.random.PRNGKey(0)
    k_obs, k_obs2, k_params = jax.random.split(key, 3)

    in_dim, out_dim = 16, 4
    params = init_params(k_params, in_dim, out_dim)

    # Prepared (cast-once) parameter sets.
    prepped_f32 = prepare_params(params, jnp.float32)
    prepped_bf16 = prepare_params(params, jnp.bfloat16)
    prepped_default = prepare_params(params)  # bf16 on v5e, f32 elsewhere

    # 1) Tiny PPO-style call (B=8), f32 path: exact match vs reference.
    obs_small = jax.random.normal(k_obs, (8, in_dim), jnp.float32)
    out_small = jax.block_until_ready(network_forward(obs_small, prepped_f32))
    ref_small = reference_forward(obs_small, params)
    assert out_small.shape == (8, out_dim)
    assert jnp.allclose(out_small, ref_small, atol=1e-4, rtol=1e-4), "f32 mismatch (B=8)"

    # 2) Multi-tile batch with a ragged tail (B=200, block_rows=64 -> 4 tiles of 56
    #    rows, small tail padding), exercising the pipelined batch grid.
    obs_big = jax.random.normal(k_obs2, (200, in_dim), jnp.float32)
    out_big = jax.block_until_ready(
        network_forward(obs_big, prepped_f32, block_rows=64))
    ref_big = reference_forward(obs_big, params)
    assert out_big.shape == (200, out_dim)
    assert jnp.allclose(out_big, ref_big, atol=1e-4, rtol=1e-4), "f32 mismatch (B=200)"

    # 3) bf16-operand / f32-accumulate path (MXU fast path), looser tolerance.
    out_bf16 = jax.block_until_ready(
        network_forward(obs_big, prepped_bf16, block_rows=64))
    assert jnp.allclose(out_bf16, ref_big, atol=5e-2, rtol=5e-2), "bf16 mismatch"

    # 4) Production path: generation-default dtype, large single tile.
    out_def = jax.block_until_ready(network_forward(obs_big, prepped_default))
    tol = 1e-4 if prepped_default["w1"].dtype == jnp.float32 else 5e-2
    assert jnp.allclose(out_def, ref_big, atol=tol, rtol=tol), "default-path mismatch"

    print("KERNEL_OK")
</pallas_src>

<mosaic_0001>
module attributes {stable_mosaic.version = 11 : i64} {
  func.func @mlp_kernel(%arg0: i32, %arg1: memref<8x16xf32, #tpu.memory_space<vmem>>, %arg2: memref<16x256xf32, #tpu.memory_space<vmem>>, %arg3: memref<1x256xf32, #tpu.memory_space<vmem>>, %arg4: memref<256x256xf32, #tpu.memory_space<vmem>>, %arg5: memref<1x256xf32, #tpu.memory_space<vmem>>, %arg6: memref<256x4xf32, #tpu.memory_space<vmem>>, %arg7: memref<1x4xf32, #tpu.memory_space<vmem>>, %arg8: memref<8x4xf32, #tpu.memory_space<vmem>>) attributes {dimension_semantics = [#tpu.dimension_semantics<parallel>], iteration_bounds = array<i64: 1>, scalar_prefetch = 0 : i64, scratch_operands = 0 : i64, tpu.core_type = #tpu.core_type<tc>, window_params = [{transform_indices = @transform_0, window_bounds = array<i64: 8, 16>}, {pipeline_mode = #tpu.pipeline_mode<synchronous>, transform_indices = @transform_1, window_bounds = array<i64: 16, 256>}, {pipeline_mode = #tpu.pipeline_mode<synchronous>, transform_indices = @transform_2, window_bounds = array<i64: 1, 256>}, {pipeline_mode = #tpu.pipeline_mode<synchronous>, transform_indices = @transform_3, window_bounds = array<i64: 256, 256>}, {pipeline_mode = #tpu.pipeline_mode<synchronous>, transform_indices = @transform_4, window_bounds = array<i64: 1, 256>}, {pipeline_mode = #tpu.pipeline_mode<synchronous>, transform_indices = @transform_5, window_bounds = array<i64: 256, 4>}, {pipeline_mode = #tpu.pipeline_mode<synchronous>, transform_indices = @transform_6, window_bounds = array<i64: 1, 4>}, {transform_indices = @transform_7, window_bounds = array<i64: 8, 4>}]} {
    %c0 = arith.constant 0 : index
    %c0_0 = arith.constant 0 : index
    %0 = vector.load %arg1[%c0, %c0_0] : memref<8x16xf32, #tpu.memory_space<vmem>>, vector<8x16xf32>
    %c0_1 = arith.constant 0 : index
    %c0_2 = arith.constant 0 : index
    %1 = vector.load %arg2[%c0_1, %c0_2] : memref<16x256xf32, #tpu.memory_space<vmem>>, vector<16x256xf32>
    %cst = arith.constant dense<0.000000e+00> : vector<8x256xf32>
    %2 = tpu.matmul %0, %1, %cst {dimension_numbers = #tpu.dot_dimension_numbers<[1], [0], [0], [1], [0, 0, 1, 1], [], []>} : vector<8x16xf32>, vector<16x256xf32>, vector<8x256xf32> -> vector<8x256xf32>
    %c0_3 = arith.constant 0 : index
    %c0_4 = arith.constant 0 : index
    %3 = vector.load %arg3[%c0_3, %c0_4] : memref<1x256xf32, #tpu.memory_space<vmem>>, vector<1x256xf32>
    %4 = vector.broadcast %3 : vector<1x256xf32> to vector<8x256xf32>
    %5 = arith.addf %2, %4 : vector<8x256xf32>
    %cst_5 = arith.constant 0.000000e+00 : f32
    %6 = vector.broadcast %cst_5 : f32 to vector<8x256xf32>
    %7 = arith.maximumf %5, %6 : vector<8x256xf32>
    %c0_6 = arith.constant 0 : index
    %c0_7 = arith.constant 0 : index
    %8 = vector.load %arg4[%c0_6, %c0_7] : memref<256x256xf32, #tpu.memory_space<vmem>>, vector<256x256xf32>
    %cst_8 = arith.constant dense<0.000000e+00> : vector<8x256xf32>
    %9 = tpu.matmul %7, %8, %cst_8 {dimension_numbers = #tpu.dot_dimension_numbers<[1], [0], [0], [1], [0, 0, 1, 1], [], []>} : vector<8x256xf32>, vector<256x256xf32>, vector<8x256xf32> -> vector<8x256xf32>
    %c0_9 = arith.constant 0 : index
    %c0_10 = arith.constant 0 : index
    %10 = vector.load %arg5[%c0_9, %c0_10] : memref<1x256xf32, #tpu.memory_space<vmem>>, vector<1x256xf32>
    %11 = vector.broadcast %10 : vector<1x256xf32> to vector<8x256xf32>
    %12 = arith.addf %9, %11 : vector<8x256xf32>
    %cst_11 = arith.constant 0.000000e+00 : f32
    %13 = vector.broadcast %cst_11 : f32 to vector<8x256xf32>
    %14 = arith.maximumf %12, %13 : vector<8x256xf32>
    %c0_12 = arith.constant 0 : index
    %c0_13 = arith.constant 0 : index
    %15 = vector.load %arg6[%c0_12, %c0_13] : memref<256x4xf32, #tpu.memory_space<vmem>>, vector<256x4xf32>
    %cst_14 = arith.constant dense<0.000000e+00> : vector<8x4xf32>
    %16 = tpu.matmul %14, %15, %cst_14 {dimension_numbers = #tpu.dot_dimension_numbers<[1], [0], [0], [1], [0, 0, 1, 1], [], []>} : vector<8x256xf32>, vector<256x4xf32>, vector<8x4xf32> -> vector<8x4xf32>
    %c0_15 = arith.constant 0 : index
    %c0_16 = arith.constant 0 : index
    %17 = vector.load %arg7[%c0_15, %c0_16] : memref<1x4xf32, #tpu.memory_space<vmem>>, vector<1x4xf32>
    %18 = vector.broadcast %17 : vector<1x4xf32> to vector<8x4xf32>
    %19 = arith.addf %16, %18 : vector<8x4xf32>
    %c0_17 = arith.constant 0 : index
    %c0_18 = arith.constant 0 : index
    %20 = vector.load %arg8[%c0_17, %c0_18] : memref<8x4xf32, #tpu.memory_space<vmem>>, vector<8x4xf32>
    tpu.vector_store %arg8[%c0_17, %c0_18], %19 {strides = array<i32>} : memref<8x4xf32, #tpu.memory_space<vmem>>, vector<8x4xf32>,
    return
  }
  func.func @transform_0(%arg0: i32) -> (i32, i32) {
    %c0_i32 = arith.constant 0 : i32
    %c0_i32_0 = arith.constant 0 : i32
    return %arg0, %c0_i32 : i32, i32
  }
  func.func @transform_1(%arg0: i32) -> (i32, i32) {
    %c0_i32 = arith.constant 0 : i32
    %c0_i32_0 = arith.constant 0 : i32
    %c0_i32_1 = arith.constant 0 : i32
    return %c0_i32, %c0_i32_0 : i32, i32
  }
  func.func @transform_2(%arg0: i32) -> (i32, i32) {
    %c0_i32 = arith.constant 0 : i32
    %c0_i32_0 = arith.constant 0 : i32
    %c0_i32_1 = arith.constant 0 : i32
    return %c0_i32, %c0_i32_0 : i32, i32
  }
  func.func @transform_3(%arg0: i32) -> (i32, i32) {
    %c0_i32 = arith.constant 0 : i32
    %c0_i32_0 = arith.constant 0 : i32
    %c0_i32_1 = arith.constant 0 : i32
    return %c0_i32, %c0_i32_0 : i32, i32
  }
  func.func @transform_4(%arg0: i32) -> (i32, i32) {
    %c0_i32 = arith.constant 0 : i32
    %c0_i32_0 = arith.constant 0 : i32
    %c0_i32_1 = arith.constant 0 : i32
    return %c0_i32, %c0_i32_0 : i32, i32
  }
  func.func @transform_5(%arg0: i32) -> (i32, i32) {
    %c0_i32 = arith.constant 0 : i32
    %c0_i32_0 = arith.constant 0 : i32
    %c0_i32_1 = arith.constant 0 : i32
    return %c0_i32, %c0_i32_0 : i32, i32
  }
  func.func @transform_6(%arg0: i32) -> (i32, i32) {
    %c0_i32 = arith.constant 0 : i32
    %c0_i32_0 = arith.constant 0 : i32
    %c0_i32_1 = arith.constant 0 : i32
    return %c0_i32, %c0_i32_0 : i32, i32
  }
  func.func @transform_7(%arg0: i32) -> (i32, i32) {
    %c0_i32 = arith.constant 0 : i32
    %c0_i32_0 = arith.constant 0 : i32
    return %arg0, %c0_i32 : i32, i32
  }
}

</mosaic_0001>

<llo_original>
// kernel: tpu_custom_call.1
$region0: #{tpu_custom_call.1}
  #allocation0 [shape = 'u32[]', space=smem, size = 0x4, offset = 0x4, fixed_abs, tag = 'smem constant byte address 0x4 - core index']
  #allocation1 [shape = 'u32[72,128]{1,0:T(1,128)}', space=vmem, size = 0x9000, scoped, tag = 'internal scratch']
  %s0 = inlined_call_operand.vmem [shape: f32[8,16], index: 0, kind: input, shape index: {}]
  %s1 = inlined_call_operand.vmem [shape: f32[16,256], index: 1, kind: input, shape index: {}]
  %s2 = inlined_call_operand.vmem [shape: f32[1,256], index: 2, kind: input, shape index: {}]
  %s3 = inlined_call_operand.hbm [shape: f32[256,256], index: 3, kind: input, shape index: {}]
  %s4 = inlined_call_operand.vmem [shape: f32[1,256], index: 4, kind: input, shape index: {}]
  %s5 = inlined_call_operand.vmem [shape: f32[256,4], index: 5, kind: input, shape index: {}]
  %s6 = inlined_call_operand.vmem [shape: f32[1,4], index: 6, kind: input, shape index: {}]
  %s7 = inlined_call_operand.vmem [shape: f32[8,4], index: 7, kind: output, shape index: {}]
  %s8 = sld [smem:[#allocation0]]
  $region42: #{tpu_custom_call.1} parent=0
    _
  %s10 = ssub.s32 1, %s8
  %s11 = scalar_select 0, %s10, %s8
  $region1: #{tpu_custom_call.1} parent=0
    #allocation2 [shape = 'u8[262144]{0}', space=vmem, size = 0x40000, scoped, tag = 'input window, operand 3, single buffered']
    #allocation3 [shape = 's32[1]{0}', space=sflag, size = 0x4, scoped, tag = 'scoped memory for tpu_custom_call.1']
    %12 = vsyncpa [#allocation3], 0
    // Predicated region
    $region2: #{tpu_custom_call.1} parent=1 // pred_check
      _
    $region3: #{tpu_custom_call.1} parent=1 // pred_check_branch
      %14 = sbr.rel (0) target = $region5
    $region4: #{tpu_custom_call.1} parent=1 // pred_region
      _
    $region5: #{tpu_custom_call.1} parent=1 // pred_fallthru
      _
    // Predicated region
    $region6: #{tpu_custom_call.1} parent=1 // pred_check
      _
    $region7: #{tpu_custom_call.1} parent=1 // pred_check_branch
      %16 = sbr.rel (0) target = $region9
    $region8: #{tpu_custom_call.1} parent=1 // pred_region
      _
    $region9: #{tpu_custom_call.1} parent=1 // pred_fallthru
      _
    // Predicated region
    $region10: #{tpu_custom_call.1} parent=1 // pred_check
      _
    $region11: #{tpu_custom_call.1} parent=1 // pred_check_branch
      %18 = sbr.rel (0) target = $region13
    $region12: #{tpu_custom_call.1} parent=1 // pred_region
      _
    $region13: #{tpu_custom_call.1} parent=1 // pred_fallthru
      _
    // Predicated region
    $region14: #{tpu_custom_call.1} parent=1 // pred_check
      _
    $region15: #{tpu_custom_call.1} parent=1 // pred_check_branch
      %20 = sbr.rel (0) target = $region17
    $region16: #{tpu_custom_call.1} parent=1 // pred_region
      %22 = vsyncadd [#allocation3], 0
      %s23 = sshll.u32 %s3, 4
      %s24 = int_to_ptr.hbm [resolvable:$true] %s23
      %s25 = sshll.u32 [#allocation2], 4
      %s26 = int_to_ptr.vmem [resolvable:$true] %s25
      %31 = dma.hbm_to_vmem [thread:$0]  %s24, 8192, %s26, [#allocation3], 256, 256, 16
    $region17: #{tpu_custom_call.1} parent=1 // pred_fallthru
      _
    // Predicated region
    $region18: #{tpu_custom_call.1} parent=1 // pred_check
      _
    $region19: #{tpu_custom_call.1} parent=1 // pred_check_branch
      %33 = sbr.rel (0) target = $region21
    $region20: #{tpu_custom_call.1} parent=1 // pred_region
      _
    $region21: #{tpu_custom_call.1} parent=1 // pred_fallthru
      _
    // Predicated region
    $region22: #{tpu_custom_call.1} parent=1 // pred_check
      _
    $region23: #{tpu_custom_call.1} parent=1 // pred_check_branch
      %35 = sbr.rel (0) target = $region25
    $region24: #{tpu_custom_call.1} parent=1 // pred_region
      _
    $region25: #{tpu_custom_call.1} parent=1 // pred_fallthru
      _
    // Predicated region
    $region26: #{tpu_custom_call.1} parent=1 // pred_check
      _
    $region27: #{tpu_custom_call.1} parent=1 // pred_check_branch
      %37 = sbr.rel (0) target = $region29
    $region28: #{tpu_custom_call.1} parent=1 // pred_region
      _
    $region29: #{tpu_custom_call.1} parent=1 // pred_fallthru
      _
    // Predicated region
    $region30: #{tpu_custom_call.1} parent=1 // pred_check
      _
    $region31: #{tpu_custom_call.1} parent=1 // pred_check_branch
      %39 = sbr.rel (0) target = $region33
    $region32: #{tpu_custom_call.1} parent=1 // pred_region
      %41 = dma.done [#allocation3], 8192
    $region33: #{tpu_custom_call.1} parent=1 // pred_fallthru
      _
    %v42 = vld [vmem:[%s0] sm:$0xff]
    %v43 = vld [vmem:[%s1] sm:$0xff]
    %v44 = vld [vmem:[%s1 + $0x8] sm:$0xff]
    %v45 = vld [vmem:[%s1 + $0x10] sm:$0xff]
    %v46 = vld [vmem:[%s1 + $0x18] sm:$0xff]
    %v47 = vld [vmem:[%s2] sm:$0x3]
    %v49 = vperm.slane %v47, 0
    %v50 = vperm.slane %v47, 1
    %vm53 = vcmask 130048
    %v55 = vsel %vm53, %v42, 0
    %57 = vmatpush.msra.mxu0 0.0
    %58 = vmatpush.msra.mxu0 0.0
    %59 = vmatpush.msra.mxu0 0.0
    %60 = vmatpush.msra.mxu0 0.0
    %61 = vmatpush.msra.mxu0 0.0
    %62 = vmatpush.msra.mxu0 0.0
    %63 = vmatpush.msra.mxu0 0.0
    %64 = vmatpush.msra.mxu0 0.0
    %65 = vmatpush.msra.mxu0 0.0
    %66 = vmatpush.msra.mxu0 0.0
    %67 = vmatpush.msra.mxu0 0.0
    %68 = vmatpush.msra.mxu0 0.0
    %69 = vmatpush.msra.mxu0 0.0
    %70 = vmatpush.msra.mxu0 0.0
    %71 = vmatpush.msra.mxu0 %v45
    %72 = vmatpush.msra.mxu0 %v43
    %73 = vmatmul.f32.gmra.mxu0 %v55
    %v74 = vpop.f32.mrf.mxu0
    %v75 = vadd.f32 %v49, %v74
    %76 = vdwg.mxu0
    %77 = vmatpush.msra.mxu0 0.0
    %78 = vmatpush.msra.mxu0 0.0
    %79 = vmatpush.msra.mxu0 0.0
    %80 = vmatpush.msra.mxu0 0.0
    %81 = vmatpush.msra.mxu0 0.0
    %82 = vmatpush.msra.mxu0 0.0
    %83 = vmatpush.msra.mxu0 0.0
    %84 = vmatpush.msra.mxu0 0.0
    %85 = vmatpush.msra.mxu0 0.0
    %86 = vmatpush.msra.mxu0 0.0
    %87 = vmatpush.msra.mxu0 0.0
    %88 = vmatpush.msra.mxu0 0.0
    %89 = vmatpush.msra.mxu0 0.0
    %90 = vmatpush.msra.mxu0 0.0
    %91 = vmatpush.msra.mxu0 %v46
    %92 = vmatpush.msra.mxu0 %v44
    %93 = vmatmul.f32.gmra.mxu0 %v55
    %v94 = vpop.f32.mrf.mxu0
    %v95 = vadd.f32 %v50, %v94
    %96 = vdwg.mxu0
    %v97 = vmax.f32 %v75, 0.0
    %v98 = vmax.f32 %v95, 0.0
    %v99 = vld [vmem:[#allocation2] sm:$0xff]
    %v100 = vld [vmem:[#allocation2 + $0x8] sm:$0xff]
    %v101 = vld [vmem:[#allocation2 + $0x10] sm:$0xff]
    %v102 = vld [vmem:[#allocation2 + $0x18] sm:$0xff]
    %v103 = vld [vmem:[#allocation2 + $0x20] sm:$0xff]
    %v104 = vld [vmem:[#allocation2 + $0x28] sm:$0xff]
    %v105 = vld [vmem:[#allocation2 + $0x30] sm:$0xff]
    %v106 = vld [vmem:[#allocation2 + $0x38] sm:$0xff]
    %v107 = vld [vmem:[#allocation2 + $0x40] sm:$0xff]
    %v108 = vld [vmem:[#allocation2 + $0x48] sm:$0xff]
    %v109 = vld [vmem:[#allocation2 + $0x50] sm:$0xff]
    %v110 = vld [vmem:[#allocation2 + $0x58] sm:$0xff]
    %v111 = vld [vmem:[#allocation2 + $0x60] sm:$0xff]
    %v112 = vld [vmem:[#allocation2 + $0x68] sm:$0xff]
    %v113 = vld [vmem:[#allocation2 + $0x70] sm:$0xff]
    %v114 = vld [vmem:[#allocation2 + $0x78] sm:$0xff]
    %v115 = vld [vmem:[#allocation2 + $0x80] sm:$0xff]
    %v116 = vld [vmem:[#allocation2 + $0x88] sm:$0xff]
    %v117 = vld [vmem:[#allocation2 + $0x90] sm:$0xff]
    %v118 = vld [vmem:[#allocation2 + $0x98] sm:$0xff]
    %v119 = vld [vmem:[#allocation2 + $0xa0] sm:$0xff]
    %v120 = vld [vmem:[#allocation2 + $0xa8] sm:$0xff]
    %v121 = vld [vmem:[#allocation2 + $0xb0] sm:$0xff]
    %v122 = vld [vmem:[#allocation2 + $0xb8] sm:$0xff]
    %v123 = vld [vmem:[#allocation2 + $0xc0] sm:$0xff]
    %v124 = vld [vmem:[#allocation2 + $0xc8] sm:$0xff]
    %v125 = vld [vmem:[#allocation2 + $0xd0] sm:$0xff]
    %v126 = vld [vmem:[#allocation2 + $0xd8] sm:$0xff]
    %v127 = vld [vmem:[#allocation2 + $0xe0] sm:$0xff]
    %v128 = vld [vmem:[#allocation2 + $0xe8] sm:$0xff]
    %v129 = vld [vmem:[#allocation2 + $0xf0] sm:$0xff]
    %v130 = vld [vmem:[#allocation2 + $0xf8] sm:$0xff]
    %v131 = vld [vmem:[#allocation2 + $0x100] sm:$0xff]
    %v132 = vld [vmem:[#allocation2 + $0x108] sm:$0xff]
    %v133 = vld [vmem:[#allocation2 + $0x110] sm:$0xff]
    %v134 = vld [vmem:[#allocation2 + $0x118] sm:$0xff]
    %v135 = vld [vmem:[#allocation2 + $0x120] sm:$0xff]
    %v136 = vld [vmem:[#allocation2 + $0x128] sm:$0xff]
    %v137 = vld [vmem:[#allocation2 + $0x130] sm:$0xff]
    %v138 = vld [vmem:[#allocation2 + $0x138] sm:$0xff]
    %v139 = vld [vmem:[#allocation2 + $0x140] sm:$0xff]
    %v140 = vld [vmem:[#allocation2 + $0x148] sm:$0xff]
    %v141 = vld [vmem:[#allocation2 + $0x150] sm:$0xff]
    %v142 = vld [vmem:[#allocation2 + $0x158] sm:$0xff]
    %v143 = vld [vmem:[#allocation2 + $0x160] sm:$0xff]
    %v144 = vld [vmem:[#allocation2 + $0x168] sm:$0xff]
    %v145 = vld [vmem:[#allocation2 + $0x170] sm:$0xff]
    %v146 = vld [vmem:[#allocation2 + $0x178] sm:$0xff]
    %v147 = vld [vmem:[#allocation2 + $0x180] sm:$0xff]
    %v148 = vld [vmem:[#allocation2 + $0x188] sm:$0xff]
    %v149 = vld [vmem:[#allocation2 + $0x190] sm:$0xff]
    %v150 = vld [vmem:[#allocation2 + $0x198] sm:$0xff]
    %v151 = vld [vmem:[#allocation2 + $0x1a0] sm:$0xff]
    %v152 = vld [vmem:[#allocation2 + $0x1a8] sm:$0xff]
    %v153 = vld [vmem:[#allocation2 + $0x1b0] sm:$0xff]
    %v154 = vld [vmem:[#allocation2 + $0x1b8] sm:$0xff]
    %v155 = vld [vmem:[#allocation2 + $0x1c0] sm:$0xff]
    %v156 = vld [vmem:[#allocation2 + $0x1c8] sm:$0xff]
    %v157 = vld [vmem:[#allocation2 + $0x1d0] sm:$0xff]
    %v158 = vld [vmem:[#allocation2 + $0x1d8] sm:$0xff]
    %v159 = vld [vmem:[#allocation2 + $0x1e0] sm:$0xff]
    %v160 = vld [vmem:[#allocation2 + $0x1e8] sm:$0xff]
    %v161 = vld [vmem:[#allocation2 + $0x1f0] sm:$0xff]
    %v162 = vld [vmem:[#allocation2 + $0x1f8] sm:$0xff]
    %v163 = vld [vmem:[%s4] sm:$0x3]
    %v165 = vperm.slane %v163, 0
    %v166 = vperm.slane %v163, 1
    %169 = vmatpush.msra.mxu0 %v129
    %170 = vmatpush.msra.mxu0 %v127
    %171 = vmatpush.msra.mxu0 %v125
    %172 = vmatpush.msra.mxu0 %v123
    %173 = vmatpush.msra.mxu0 %v121
    %174 = vmatpush.msra.mxu0 %v119
    %175 = vmatpush.msra.mxu0 %v117
    %176 = vmatpush.msra.mxu0 %v115
    %177 = vmatpush.msra.mxu0 %v113
    %178 = vmatpush.msra.mxu0 %v111
    %179 = vmatpush.msra.mxu0 %v109
    %180 = vmatpush.msra.mxu0 %v107
    %181 = vmatpush.msra.mxu0 %v105
    %182 = vmatpush.msra.mxu0 %v103
    %183 = vmatpush.msra.mxu0 %v101
    %184 = vmatpush.msra.mxu0 %v99
    %185 = vmatmul.f32.gmra.mxu0 %v97
    %v186 = vpop.f32.mrf.mxu0
    %v187 = vadd.f32 %v165, %v186
    %188 = vdwg.mxu0
    %189 = vmatpush.msra.mxu0 %v161
    %190 = vmatpush.msra.mxu0 %v159
    %191 = vmatpush.msra.mxu0 %v157
    %192 = vmatpush.msra.mxu0 %v155
    %193 = vmatpush.msra.mxu0 %v153
    %194 = vmatpush.msra.mxu0 %v151
    %195 = vmatpush.msra.mxu0 %v149
    %196 = vmatpush.msra.mxu0 %v147
    %197 = vmatpush.msra.mxu0 %v145
    %198 = vmatpush.msra.mxu0 %v143
    %199 = vmatpush.msra.mxu0 %v141
    %200 = vmatpush.msra.mxu0 %v139
    %201 = vmatpush.msra.mxu0 %v137
    %202 = vmatpush.msra.mxu0 %v135
    %203 = vmatpush.msra.mxu0 %v133
    %204 = vmatpush.msra.mxu0 %v131
    %205 = vmatmul.f32.gmra.mxu0 %v98
    %v206 = vpop.f32.mrf.mxu0
    %v207 = vadd.f32 %v187, %v206
    %208 = vdwg.mxu0
    %209 = vmatpush.msra.mxu0 %v130
    %210 = vmatpush.msra.mxu0 %v128
    %211 = vmatpush.msra.mxu0 %v126
    %212 = vmatpush.msra.mxu0 %v124
    %213 = vmatpush.msra.mxu0 %v122
    %214 = vmatpush.msra.mxu0 %v120
    %215 = vmatpush.msra.mxu0 %v118
    %216 = vmatpush.msra.mxu0 %v116
    %217 = vmatpush.msra.mxu0 %v114
    %218 = vmatpush.msra.mxu0 %v112
    %219 = vmatpush.msra.mxu0 %v110
    %220 = vmatpush.msra.mxu0 %v108
    %221 = vmatpush.msra.mxu0 %v106
    %222 = vmatpush.msra.mxu0 %v104
    %223 = vmatpush.msra.mxu0 %v102
    %224 = vmatpush.msra.mxu0 %v100
    %225 = vmatmul.f32.gmra.mxu0 %v97
    %v226 = vpop.f32.mrf.mxu0
    %v227 = vadd.f32 %v166, %v226
    %228 = vdwg.mxu0
    %229 = vmatpush.msra.mxu0 %v162
    %230 = vmatpush.msra.mxu0 %v160
    %231 = vmatpush.msra.mxu0 %v158
    %232 = vmatpush.msra.mxu0 %v156
    %233 = vmatpush.msra.mxu0 %v154
    %234 = vmatpush.msra.mxu0 %v152
    %235 = vmatpush.msra.mxu0 %v150
    %236 = vmatpush.msra.mxu0 %v148
    %237 = vmatpush.msra.mxu0 %v146
    %238 = vmatpush.msra.mxu0 %v144
    %239 = vmatpush.msra.mxu0 %v142
    %240 = vmatpush.msra.mxu0 %v140
    %241 = vmatpush.msra.mxu0 %v138
    %242 = vmatpush.msra.mxu0 %v136
    %243 = vmatpush.msra.mxu0 %v134
    %244 = vmatpush.msra.mxu0 %v132
    %245 = vmatmul.f32.gmra.mxu0 %v98
    %v246 = vpop.f32.mrf.mxu0
    %v247 = vadd.f32 %v227, %v246
    %248 = vdwg.mxu0
    %v249 = vmax.f32 %v207, 0.0
    %v250 = vmax.f32 %v247, 0.0
    %v251 = vld [vmem:[%s5] sm:$0xff]
    %v252 = vld [vmem:[%s5 + $0x8] sm:$0xff]
    %v253 = vld [vmem:[%s5 + $0x10] sm:$0xff]
    %v254 = vld [vmem:[%s5 + $0x18] sm:$0xff]
    %v255 = vld [vmem:[%s5 + $0x20] sm:$0xff]
    %v256 = vld [vmem:[%s5 + $0x28] sm:$0xff]
    %v257 = vld [vmem:[%s5 + $0x30] sm:$0xff]
    %v258 = vld [vmem:[%s5 + $0x38] sm:$0xff]
    %v259 = vld [vmem:[%s5 + $0x40] sm:$0xff]
    %v260 = vld [vmem:[%s5 + $0x48] sm:$0xff]
    %v261 = vld [vmem:[%s5 + $0x50] sm:$0xff]
    %v262 = vld [vmem:[%s5 + $0x58] sm:$0xff]
    %v263 = vld [vmem:[%s5 + $0x60] sm:$0xff]
    %v264 = vld [vmem:[%s5 + $0x68] sm:$0xff]
    %v265 = vld [vmem:[%s5 + $0x70] sm:$0xff]
    %v266 = vld [vmem:[%s5 + $0x78] sm:$0xff]
    %v267 = vld [vmem:[%s5 + $0x80] sm:$0xff]
    %v268 = vld [vmem:[%s5 + $0x88] sm:$0xff]
    %v269 = vld [vmem:[%s5 + $0x90] sm:$0xff]
    %v270 = vld [vmem:[%s5 + $0x98] sm:$0xff]
    %v271 = vld [vmem:[%s5 + $0xa0] sm:$0xff]
    %v272 = vld [vmem:[%s5 + $0xa8] sm:$0xff]
    %v273 = vld [vmem:[%s5 + $0xb0] sm:$0xff]
    %v274 = vld [vmem:[%s5 + $0xb8] sm:$0xff]
    %v275 = vld [vmem:[%s5 + $0xc0] sm:$0xff]
    %v276 = vld [vmem:[%s5 + $0xc8] sm:$0xff]
    %v277 = vld [vmem:[%s5 + $0xd0] sm:$0xff]
    %v278 = vld [vmem:[%s5 + $0xd8] sm:$0xff]
    %v279 = vld [vmem:[%s5 + $0xe0] sm:$0xff]
    %v280 = vld [vmem:[%s5 + $0xe8] sm:$0xff]
    %v281 = vld [vmem:[%s5 + $0xf0] sm:$0xff]
    %v282 = vld [vmem:[%s5 + $0xf8] sm:$0xff]
    %v283 = vld [vmem:[%s6] sm:$0x1]
    %v285 = vperm.slane %v283, 0
    %287 = vmatpush.msra.mxu0 %v266
    %288 = vmatpush.msra.mxu0 %v265
    %289 = vmatpush.msra.mxu0 %v264
    %290 = vmatpush.msra.mxu0 %v263
    %291 = vmatpush.msra.mxu0 %v262
    %292 = vmatpush.msra.mxu0 %v261
    %293 = vmatpush.msra.mxu0 %v260
    %294 = vmatpush.msra.mxu0 %v259
    %295 = vmatpush.msra.mxu0 %v258
    %296 = vmatpush.msra.mxu0 %v257
    %297 = vmatpush.msra.mxu0 %v256
    %298 = vmatpush.msra.mxu0 %v255
    %299 = vmatpush.msra.mxu0 %v254
    %300 = vmatpush.msra.mxu0 %v253
    %301 = vmatpush.msra.mxu0 %v252
    %302 = vmatpush.msra.mxu0 %v251
    %303 = vmatmul.f32.gmra.mxu0 %v249
    %v304 = vpop.f32.mrf.mxu0
    %v305 = vadd.f32 %v285, %v304
    %306 = vdwg.mxu0
    %307 = vmatpush.msra.mxu0 %v282
    %308 = vmatpush.msra.mxu0 %v281
    %309 = vmatpush.msra.mxu0 %v280
    %310 = vmatpush.msra.mxu0 %v279
    %311 = vmatpush.msra.mxu0 %v278
    %312 = vmatpush.msra.mxu0 %v277
    %313 = vmatpush.msra.mxu0 %v276
    %314 = vmatpush.msra.mxu0 %v275
    %315 = vmatpush.msra.mxu0 %v274
    %316 = vmatpush.msra.mxu0 %v273
    %317 = vmatpush.msra.mxu0 %v272
    %318 = vmatpush.msra.mxu0 %v271
    %319 = vmatpush.msra.mxu0 %v270
    %320 = vmatpush.msra.mxu0 %v269
    %321 = vmatpush.msra.mxu0 %v268
    %322 = vmatpush.msra.mxu0 %v267
    %323 = vmatmul.f32.gmra.mxu0 %v250
    %v324 = vpop.f32.mrf.mxu0
    %v325 = vadd.f32 %v305, %v324
    %326 = vdwg.mxu0
    %vm327 = vcmask 31744
    %328 = vst.msk [vmem:[%s7] sm:$0xff] %vm327, %v325
    // Predicated region
    $region34: #{tpu_custom_call.1} parent=1 // pred_check
      _
    $region35: #{tpu_custom_call.1} parent=1 // pred_check_branch
      %330 = sbr.rel (0) target = $region37
    $region36: #{tpu_custom_call.1} parent=1 // pred_region
      _
    $region37: #{tpu_custom_call.1} parent=1 // pred_fallthru
      _
    // Predicated region
    $region38: #{tpu_custom_call.1} parent=1 // pred_check
      _
    $region39: #{tpu_custom_call.1} parent=1 // pred_check_branch
      %332 = sbr.rel (0) target = $region41
    $region40: #{tpu_custom_call.1} parent=1 // pred_region
      _
    $region41: #{tpu_custom_call.1} parent=1 // pred_fallthru
      _
    %333 = vsyncpa [#allocation3], 1

</llo_original>
